<compile_context>
chip_gen: v7x
topology: tpu7x:2x2x1
jax: 0.10.0
libtpu: 0.0.40
codegen_flags: <defaults>
</compile_context>

<pallas_src>
import jax
import jax.numpy as jnp
from jax.experimental import pallas as pl
from jax.experimental.pallas import tpu as pltpu


def _outconv_kernel(x_ref, w_ref, b_ref, o_ref):
    # x_ref: (TB, C_in, TL), w_ref: (C_out, C_in), b_ref: (C_out, 1),
    # o_ref: (TB, C_out, TL)
    w = w_ref[...]
    b = b_ref[...]
    # TB is small and static (<= 8): unrolled per-batch 2-D matmuls keep the
    # lowering simple and every store lane-dense.
    for i in range(x_ref.shape[0]):
        acc = jnp.dot(w, x_ref[i], preferred_element_type=jnp.float32)
        o_ref[i] = (acc + b).astype(o_ref.dtype)


def _select_tiles(B, C_in, C_out, L, target_bytes=4 << 20):
    """Pick (TB, TL) so each grid step moves ~target_bytes of x+out."""
    bytes_per_col = 4 * (C_in + C_out)
    cols_target = max(target_bytes // bytes_per_col, 128)

    if L < 128:
        # Full-extent last dim (only legal non-128-multiple block shape).
        tl = L
    else:
        tl = min((cols_target // 128) * 128, (L // 128) * 128)
        tl = max(tl, 128)

    tb = int(min(B, max(1, cols_target // max(tl, 1)), 8))

    def n_blocks(tb_, tl_):
        return pl.cdiv(B, tb_) * pl.cdiv(L, tl_)

    # v7x megacore: ensure >= 2 grid blocks when the problem allows it.
    if n_blocks(tb, tl) < 2:
        if tb >= 2:
            tb = max(1, tb // 2)
        elif tl >= 256:
            tl = max(128, ((tl // 2) // 128) * 128)
    return tb, tl


def outconv_forward(x, weight, bias):
    """1x1 Conv1d forward.

    x: (B, C_in, L) float32; weight: (C_out, C_in, 1); bias: (C_out,).
    Returns (B, C_out, L).
    """
    B, C_in, L = x.shape
    C_out = weight.shape[0]

    w2d = weight[:, :, 0]            # (C_out, C_in)
    b2d = bias.reshape(C_out, 1)     # (C_out, 1) -> broadcasts over lanes

    TB, TL = _select_tiles(B, C_in, C_out, L)
    grid = (pl.cdiv(B, TB), pl.cdiv(L, TL))

    # Explicit VMEM budget: double-buffered x + out blocks plus resident params.
    vmem_bytes = 2 * 4 * TB * TL * (C_in + C_out) + 2 * 4 * (C_out * C_in + C_out)
    vmem_limit = int(min(max(vmem_bytes + (8 << 20), 32 << 20), 48 << 20))

    cost = pl.CostEstimate(
        flops=2 * B * C_out * C_in * L,
        bytes_accessed=4 * (B * C_in * L + B * C_out * L + C_out * C_in + C_out),
        transcendentals=0,
    )

    return pl.pallas_call(
        _outconv_kernel,
        out_shape=jax.ShapeDtypeStruct((B, C_out, L), x.dtype),
        grid_spec=pltpu.PrefetchScalarGridSpec(
            num_scalar_prefetch=0,
            grid=grid,
            in_specs=[
                pl.BlockSpec((TB, C_in, TL), lambda b, l: (b, 0, l)),
                pl.BlockSpec((C_out, C_in), lambda b, l: (0, 0)),   # resident
                pl.BlockSpec((C_out, 1), lambda b, l: (0, 0)),      # resident
            ],
            out_specs=pl.BlockSpec((TB, C_out, TL), lambda b, l: (b, 0, l)),
        ),
        compiler_params=pltpu.CompilerParams(
            dimension_semantics=("parallel", "parallel"),
            vmem_limit_bytes=vmem_limit,
        ),
        cost_estimate=cost,
    )(x, w2d, b2d)


def _reference(x, weight, bias):
    return jnp.einsum("bcl,oc->bol", x, weight[:, :, 0]) + bias[None, :, None]


if __name__ == "__main__":
    key = jax.random.PRNGKey(0)
    k_x, k_w, k_b, k_x2 = jax.random.split(key, 4)

    B, C_in, C_out, Lseq = 2, 4, 3, 16

    # Deterministic parameter init (Conv1d weight shape: (C_out, C_in, 1)).
    bound = 1.0 / (C_in ** 0.5)
    weight = jax.random.uniform(k_w, (C_out, C_in, 1), jnp.float32,
                                minval=-bound, maxval=bound)
    bias = jax.random.uniform(k_b, (C_out,), jnp.float32,
                              minval=-bound, maxval=bound)

    # Case 1: small L (single full-extent L block, batch-split grid).
    x = jax.random.normal(k_x, (B, C_in, Lseq), dtype=jnp.float32)
    out = outconv_forward(x, weight, bias)
    jax.block_until_ready(out)
    ref = _reference(x, weight, bias)
    assert out.shape == (B, C_out, Lseq)
    assert jnp.allclose(out, ref, atol=1e-5, rtol=1e-5)

    # Case 2: L not a multiple of 128 -> exercises the masked partial L block
    # (no wrapper padding, no slice-back).
    L_big = 1100
    x_big = jax.random.normal(k_x2, (B, C_in, L_big), dtype=jnp.float32)
    out_big = outconv_forward(x_big, weight, bias)
    jax.block_until_ready(out_big)
    ref_big = _reference(x_big, weight, bias)
    assert out_big.shape == (B, C_out, L_big)
    assert jnp.allclose(out_big, ref_big, atol=1e-5, rtol=1e-5)

    print("KERNEL_OK")
</pallas_src>

<mosaic_0001>
module attributes {stable_mosaic.version = 11 : i64} {
  func.func @_outconv_kernel(%arg0: i32, %arg1: i32, %arg2: memref<1x4x16xf32, #tpu.memory_space<vmem>>, %arg3: memref<3x4xf32, #tpu.memory_space<vmem>>, %arg4: memref<3x1xf32, #tpu.memory_space<vmem>>, %arg5: memref<1x3x16xf32, #tpu.memory_space<vmem>>) attributes {dimension_semantics = [#tpu.dimension_semantics<parallel>, #tpu.dimension_semantics<parallel>], iteration_bounds = array<i64: 2, 1>, scalar_prefetch = 0 : i64, scratch_operands = 0 : i64, tpu.core_type = #tpu.core_type<tc>, window_params = [{transform_indices = @transform_0, window_bounds = array<i64: 1, 4, 16>}, {pipeline_mode = #tpu.pipeline_mode<synchronous>, transform_indices = @transform_1, window_bounds = array<i64: 3, 4>}, {pipeline_mode = #tpu.pipeline_mode<synchronous>, transform_indices = @transform_2, window_bounds = array<i64: 3, 1>}, {transform_indices = @transform_3, window_bounds = array<i64: 1, 3, 16>}]} {
    %c0 = arith.constant 0 : index
    %c0_0 = arith.constant 0 : index
    %0 = vector.load %arg3[%c0, %c0_0] : memref<3x4xf32, #tpu.memory_space<vmem>>, vector<3x4xf32>
    %c0_1 = arith.constant 0 : index
    %c0_2 = arith.constant 0 : index
    %1 = vector.load %arg4[%c0_1, %c0_2] : memref<3x1xf32, #tpu.memory_space<vmem>>, vector<3x1xf32>
    %c0_3 = arith.constant 0 : index
    %c0_4 = arith.constant 0 : index
    %c0_5 = arith.constant 0 : index
    %2 = vector.load %arg2[%c0_3, %c0_4, %c0_5] : memref<1x4x16xf32, #tpu.memory_space<vmem>>, vector<1x4x16xf32>
    %3 = vector.shape_cast %2 : vector<1x4x16xf32> to vector<4x16xf32>
    %cst = arith.constant dense<0.000000e+00> : vector<3x16xf32>
    %4 = tpu.matmul %0, %3, %cst {dimension_numbers = #tpu.dot_dimension_numbers<[1], [0], [0], [1], [0, 0, 1, 1], [], []>} : vector<3x4xf32>, vector<4x16xf32>, vector<3x16xf32> -> vector<3x16xf32>
    %5 = vector.broadcast %1 : vector<3x1xf32> to vector<3x16xf32>
    %6 = arith.addf %4, %5 : vector<3x16xf32>
    %c0_6 = arith.constant 0 : index
    %c0_7 = arith.constant 0 : index
    %c0_8 = arith.constant 0 : index
    %7 = vector.load %arg5[%c0_6, %c0_7, %c0_8] : memref<1x3x16xf32, #tpu.memory_space<vmem>>, vector<1x3x16xf32>
    %8 = vector.shape_cast %7 : vector<1x3x16xf32> to vector<3x16xf32>
    %9 = vector.shape_cast %6 : vector<3x16xf32> to vector<1x3x16xf32>
    tpu.vector_store %arg5[%c0_6, %c0_7, %c0_8], %9 {strides = array<i32>} : memref<1x3x16xf32, #tpu.memory_space<vmem>>, vector<1x3x16xf32>,
    return
  }
  func.func @transform_0(%arg0: i32, %arg1: i32) -> (i32, i32, i32) {
    %c0_i32 = arith.constant 0 : i32
    %c0_i32_0 = arith.constant 0 : i32
    return %arg0, %c0_i32, %arg1 : i32, i32, i32
  }
  func.func @transform_1(%arg0: i32, %arg1: i32) -> (i32, i32) {
    %c0_i32 = arith.constant 0 : i32
    %c0_i32_0 = arith.constant 0 : i32
    %c0_i32_1 = arith.constant 0 : i32
    return %c0_i32, %c0_i32_0 : i32, i32
  }
  func.func @transform_2(%arg0: i32, %arg1: i32) -> (i32, i32) {
    %c0_i32 = arith.constant 0 : i32
    %c0_i32_0 = arith.constant 0 : i32
    %c0_i32_1 = arith.constant 0 : i32
    return %c0_i32, %c0_i32_0 : i32, i32
  }
  func.func @transform_3(%arg0: i32, %arg1: i32) -> (i32, i32, i32) {
    %c0_i32 = arith.constant 0 : i32
    %c0_i32_0 = arith.constant 0 : i32
    return %arg0, %c0_i32, %arg1 : i32, i32, i32
  }
}

</mosaic_0001>

<llo_original>
// kernel: tpu_custom_call.1
$region0: #{tpu_custom_call.1}
  #allocation0 [shape = 'u32[]', space=smem, size = 0x4, offset = 0x4, fixed_abs, tag = 'smem constant byte address 0x4 - core index']
  #allocation1 [shape = 'u32[144,128]{1,0:T(1,128)}', space=vmem, size = 0x12000, scoped, tag = 'internal scratch']
  %s0 = inlined_call_operand.hbm [shape: f32[2,4,16], index: 0, kind: input, shape index: {}]
  %s1 = inlined_call_operand.vmem [shape: f32[3,4], index: 1, kind: input, shape index: {}]
  %s2 = inlined_call_operand.vmem [shape: f32[3,1], index: 2, kind: input, shape index: {}]
  %s3 = inlined_call_operand.vmem [shape: f32[2,3,16], index: 3, kind: output, shape index: {}]
  %s4 = sld [smem:[#allocation0]]
  $region49: #{tpu_custom_call.1} parent=0
    _
  %s6 = ssub.s32 1, %s4
  %s7 = scalar_select 0, %s6, %s4
  $region1: #{tpu_custom_call.1} parent=0
    #allocation2 [shape = 'u8[4096]{0}', space=vmem, size = 0x1000, scoped, tag = 'input window, operand 0']
    #allocation3 [shape = 's32[2]{0}', space=sflag, size = 0x8, scoped, tag = 'scoped memory for tpu_custom_call.1']
    %8 = vsyncpa [#allocation3], 0
    %s9 = scalar_lea.sflag [#allocation3], 1
    %10 = vsyncpa %s9, 0
    loop: start=0, step=1, limit=4
    $region2: #{tpu_custom_call.1} parent=1 // loop_pre_header
      _
    $region3: #{tpu_custom_call.1} parent=1 // loop_header
      %s12 = sphi 0, %s16
      %p13 = scmp.ge.s32.totalorder %s12, 4
      %s19 = sphi 0, %s31
      %s20 = sphi 0, %s27
      %s21 = sphi 0, %s19
      %s22 = sphi 0, %s20
      %s23 = sphi 0, %s21
      %s24 = sphi 0, %s22
      %s36 = sphi 0, %s38
      %s39 = sphi 0, %s36
      %s40 = sphi 0, %s39
      %s56 = sphi 0, %s40
      %s60 = sphi 0, %s60
      %s62 = sphi 0, %s60
      %s63 = sphi 0, %s62
      %s77 = sphi 0, %s63
      %s81 = sphi 0, %s81
      %s83 = sphi 0, %s81
      %s84 = sphi 0, %s83
      %s98 = sphi 0, %s84
      %s106 = sphi 0, %s108
      %s109 = sphi 0, %s106
      %s110 = sphi 0, %s109
      %s126 = sphi 0, %s110
    $region4: #{tpu_custom_call.1} parent=1 // loop_header_branch
      %15 = sbr.rel (%p13) target = $region8
    $region5: #{tpu_custom_call.1} parent=1 // loop_body
      %s17 = ssub.s32 %s12, 1
      %s18 = ssub.s32 %s12, 2
      %s25 = sadd.s32 1, %s20
      %p26 = scmp.ge.s32.totalorder %s25, 1
      %s27 = scalar_select %p26, 0, %s25
      %s28 = sadd.s32 1, %s19
      %s29 = scalar_select %p26, %s28, %s19
      %p30 = scmp.ge.s32.totalorder %s29, 2
      %s31 = scalar_select %p30, 0, %s29
      %s32 = ssub.s32 %s19, %s31
      %s33 = ssub.s32 %s20, %s27
      %s34 = sor.u32 %s32, %s33
      %p35 = scmp.eq.s32.totalorder %s34, 0
      %s37 = sadd.s32 %s36, 1
      %s38 = scalar_select %p35, %s36, %s37
      %p41 = pneg %p35
      %p42 = scmp.eq.s32.totalorder %s12, 1
      %p43 = por %p41, %p42
      %p44 = scmp.ne.s32.totalorder %s36, %s39
      %p45 = scmp.eq.s32.totalorder %s12, 0
      %p46 = por %p44, %p45
      %p47 = scmp.ne.s32.totalorder %s36, %s39
      %p48 = scmp.eq.s32.totalorder %s17, 1
      %p49 = por %p47, %p48
      %p50 = scmp.ne.s32.totalorder %s39, %s40
      %p51 = scmp.eq.s32.totalorder %s17, 0
      %p52 = por %p50, %p51
      %p53 = scmp.ne.s32.totalorder %s39, %s40
      %p54 = scmp.eq.s32.totalorder %s18, 1
      %p55 = por %p53, %p54
      %p57 = scmp.ne.s32.totalorder %s40, %s56
      %p58 = scmp.eq.s32.totalorder %s18, 0
      %p59 = por %p57, %p58
      %s61 = sadd.s32 %s60, 1
      %p64 = scmp.eq.s32.totalorder %s12, 1
      %p65 = scmp.ne.s32.totalorder %s60, %s62
      %p66 = scmp.eq.s32.totalorder %s12, 0
      %p67 = por %p65, %p66
      %p68 = scmp.ne.s32.totalorder %s60, %s62
      %p69 = scmp.eq.s32.totalorder %s17, 1
      %p70 = por %p68, %p69
      %p71 = scmp.ne.s32.totalorder %s62, %s63
      %p72 = scmp.eq.s32.totalorder %s17, 0
      %p73 = por %p71, %p72
      %p74 = scmp.ne.s32.totalorder %s62, %s63
      %p75 = scmp.eq.s32.totalorder %s18, 1
      %p76 = por %p74, %p75
      %p78 = scmp.ne.s32.totalorder %s63, %s77
      %p79 = scmp.eq.s32.totalorder %s18, 0
      %p80 = por %p78, %p79
      %s82 = sadd.s32 %s81, 1
      %p85 = scmp.eq.s32.totalorder %s12, 1
      %p86 = scmp.ne.s32.totalorder %s81, %s83
      %p87 = scmp.eq.s32.totalorder %s12, 0
      %p88 = por %p86, %p87
      %p89 = scmp.ne.s32.totalorder %s81, %s83
      %p90 = scmp.eq.s32.totalorder %s17, 1
      %p91 = por %p89, %p90
      %p92 = scmp.ne.s32.totalorder %s83, %s84
      %p93 = scmp.eq.s32.totalorder %s17, 0
      %p94 = por %p92, %p93
      %p95 = scmp.ne.s32.totalorder %s83, %s84
      %p96 = scmp.eq.s32.totalorder %s18, 1
      %p97 = por %p95, %p96
      %p99 = scmp.ne.s32.totalorder %s84, %s98
      %p100 = scmp.eq.s32.totalorder %s18, 0
      %p101 = por %p99, %p100
      %s102 = ssub.s32 %s19, %s31
      %s103 = ssub.s32 %s20, %s27
      %s104 = sor.u32 %s102, %s103
      %p105 = scmp.eq.s32.totalorder %s104, 0
      %s107 = sadd.s32 %s106, 1
      %s108 = scalar_select %p105, %s106, %s107
      %p111 = pneg %p105
      %p112 = scmp.eq.s32.totalorder %s12, 1
      %p113 = por %p111, %p112
      %p114 = scmp.ne.s32.totalorder %s106, %s109
      %p115 = scmp.eq.s32.totalorder %s12, 0
      %p116 = por %p114, %p115
      %p117 = scmp.ne.s32.totalorder %s106, %s109
      %p118 = scmp.eq.s32.totalorder %s17, 1
      %p119 = por %p117, %p118
      %p120 = scmp.ne.s32.totalorder %s109, %s110
      %p121 = scmp.eq.s32.totalorder %s17, 0
      %p122 = por %p120, %p121
      %p123 = scmp.ne.s32.totalorder %s109, %s110
      %p124 = scmp.eq.s32.totalorder %s18, 1
      %p125 = por %p123, %p124
      %p127 = scmp.ne.s32.totalorder %s110, %s126
      %p128 = scmp.eq.s32.totalorder %s18, 0
      %p129 = por %p127, %p128
      %p130 = scmp.le.s32.totalorder 1, %s12
      %p131 = scmp.lt.s32.totalorder %s12, 3
      %p132 = pnand %p130, %p131
      %p133 = pneg %p132
      // Predicated region
      $region9: #{tpu_custom_call.1} parent=5 // pred_check
        _
      $region10: #{tpu_custom_call.1} parent=5 // pred_check_branch
        %135 = sbr.rel (%p132) target = $region12
      $region11: #{tpu_custom_call.1} parent=5 // pred_region
        %s136 = ssub.s32 %s12, 1
        // Predicated region
        $region13: #{tpu_custom_call.1} parent=11 // pred_check
          %p137 = pneg %p73
        $region14: #{tpu_custom_call.1} parent=11 // pred_check_branch
          %139 = sbr.rel (%p137) target = $region16
        $region15: #{tpu_custom_call.1} parent=11 // pred_region
          _
        $region16: #{tpu_custom_call.1} parent=11 // pred_fallthru
          _
        // Predicated region
        $region17: #{tpu_custom_call.1} parent=11 // pred_check
          %p140 = pneg %p94
        $region18: #{tpu_custom_call.1} parent=11 // pred_check_branch
          %142 = sbr.rel (%p140) target = $region20
        $region19: #{tpu_custom_call.1} parent=11 // pred_region
          _
        $region20: #{tpu_custom_call.1} parent=11 // pred_fallthru
          _
      $region12: #{tpu_custom_call.1} parent=5 // pred_fallthru
        _
      %p143 = scmp.lt.s32.totalorder %s12, 2
      // Predicated region
      $region21: #{tpu_custom_call.1} parent=5 // pred_check
        %p144 = pneg %p143
      $region22: #{tpu_custom_call.1} parent=5 // pred_check_branch
        %146 = sbr.rel (%p144) target = $region24
      $region23: #{tpu_custom_call.1} parent=5 // pred_region
        // Predicated region
        $region25: #{tpu_custom_call.1} parent=23 // pred_check
          %p147 = pneg %p46
        $region26: #{tpu_custom_call.1} parent=23 // pred_check_branch
          %149 = sbr.rel (%p147) target = $region28
        $region27: #{tpu_custom_call.1} parent=23 // pred_region
          %s150 = sand.u32 %s36, 1
          %s151 = scalar_lea.sflag [#allocation3], %s150
          %s152 = sand.u32 %s36, 1
          %s153 = smul.addr %s152, 4
          %s154 = scalar_lea.vmem [#allocation2], %s153
          %s156 = ssub.s32 64, 64
          %157 = vsyncadd %s151, %s156
          %s158 = sadd.s32 %s20, %s19
          %s159 = smul.addr %s158, 64
          %s160 = scalar_lea.hbm %s0, %s159
          %s162 = sshll.u32 %s154, 4
          %s163 = int_to_ptr.vmem [resolvable:$true] %s162
          %165 = dma.hbm_to_vmem [thread:$0]  %s160, 64, %s163, %s151
        $region28: #{tpu_custom_call.1} parent=23 // pred_fallthru
          _
      $region24: #{tpu_custom_call.1} parent=5 // pred_fallthru
        _
      %p166 = scmp.le.s32.totalorder 1, %s12
      %p167 = scmp.lt.s32.totalorder %s12, 3
      %p168 = pnand %p166, %p167
      %p169 = pneg %p168
      // Predicated region
      $region29: #{tpu_custom_call.1} parent=5 // pred_check
        _
      $region30: #{tpu_custom_call.1} parent=5 // pred_check_branch
        %171 = sbr.rel (%p168) target = $region32
      $region31: #{tpu_custom_call.1} parent=5 // pred_region
        %s172 = ssub.s32 %s12, 1
        %s173 = sand.u32 %s39, 1
        %s174 = scalar_lea.sflag [#allocation3], %s173
        %s175 = sand.u32 %s39, 1
        %s176 = smul.addr %s175, 4
        %s177 = scalar_lea.vmem [#allocation2], %s176
        // Predicated region
        $region33: #{tpu_custom_call.1} parent=31 // pred_check
          %p178 = pneg %p52
        $region34: #{tpu_custom_call.1} parent=31 // pred_check_branch
          %180 = sbr.rel (%p178) target = $region36
        $region35: #{tpu_custom_call.1} parent=31 // pred_region
          %181 = dma.done %s174, 64
        $region36: #{tpu_custom_call.1} parent=31 // pred_fallthru
          _
        %s182 = sand.u32 %s39, 1
        %s183 = scalar_lea.sflag [#allocation3], %s182
        %s184 = sand.u32 %s39, 1
        %s185 = smul.addr %s184, 4
        %s186 = scalar_lea.vmem [#allocation2], %s185
        %p187 = pneg %p52
        %p188 = pneg %p49
        %p189 = pneg %p73
        %p190 = pneg %p70
        %p191 = pneg %p94
        %p192 = pneg %p91
        %p193 = pneg %p122
        %p194 = pneg %p119
        %p195 = scmp.lt.s32.totalorder %s21, 1
        %s196 = scalar_select %p195, %s21, 1
        %p197 = scmp.lt.s32.totalorder %s22, 0
        %s198 = scalar_select %p197, %s22, 0
        %s199 = sadd.s32 %s198, %s196
        %s200 = smul.addr %s199, 4
        %s201 = scalar_lea.vmem %s3, %s200
        %p202 = scmp.lt.s32.totalorder %s21, 1
        %s203 = scalar_select %p202, %s21, 1
        %p204 = scmp.lt.s32.totalorder %s22, 0
        %s205 = scalar_select %p204, %s22, 0
        %s206 = sadd.s32 %s205, %s203
        %s207 = smul.addr %s206, 4
        %s208 = scalar_lea.vmem %s3, %s207
        %v209 = vld [vmem:[%s1] sm:$0x7]
        %v210 = vld [vmem:[%s2] sm:$0x7]
        %v211 = vld [vmem:[%s177] sm:$0xf]
        %213 = vset.pattern.permute.xlu0 0
        %214 = vperm.xlu0 %213, %v210
        %v215 = vpop.permute.xlu0 %214
        %vm217 = vcmask 31744
        %v219 = vsel %vm217, %v209, 0
        %vm221 = vcmask 1043456
        %v223 = vsel %vm221, %v211, 0
        %225 = vmatprep.subr.mxu0 0.0
        %226 = vmatpush1.msra.mxu0 %v223
        %227 = vmatprep.subr.mxu0 0.0
        %228 = vmatpush1.msra.mxu0 0.0
        %229 = vmatprep.subr.mxu0 0.0
        %230 = vmatpush1.msra.mxu0 0.0
        %231 = vmatprep.subr.mxu0 0.0
        %232 = vmatpush1.msra.mxu0 0.0
        %233 = vmatprep.subr.mxu0 0.0
        %234 = vmatpush1.msra.mxu0 0.0
        %235 = vmatprep.subr.mxu0 0.0
        %236 = vmatpush1.msra.mxu0 0.0
        %237 = vmatprep.subr.mxu0 0.0
        %238 = vmatpush1.msra.mxu0 0.0
        %239 = vmatprep.subr.mxu0 0.0
        %240 = vmatpush1.msra.mxu0 0.0
        %241 = vmatprep.subr.mxu0 0.0
        %242 = vmatpush1.msra.mxu0 0.0
        %243 = vmatprep.subr.mxu0 0.0
        %244 = vmatpush1.msra.mxu0 0.0
        %245 = vmatprep.subr.mxu0 0.0
        %246 = vmatpush1.msra.mxu0 0.0
        %247 = vmatprep.subr.mxu0 0.0
        %248 = vmatpush1.msra.mxu0 0.0
        %249 = vmatprep.subr.mxu0 0.0
        %250 = vmatpush1.msra.mxu0 0.0
        %251 = vmatprep.subr.mxu0 0.0
        %252 = vmatpush1.msra.mxu0 0.0
        %253 = vmatprep.subr.mxu0 0.0
        %254 = vmatpush1.msra.mxu0 0.0
        %255 = vmatprep.subr.mxu0 0.0
        %256 = vmatpush1.msra.mxu0 0.0
        %257 = vmatprep.subr.mxu0 0.0
        %258 = vmatpush1.msra.mxu0 0.0
        %259 = vmatprep.subr.mxu0 0.0
        %260 = vmatpush1.msra.mxu0 0.0
        %261 = vmatprep.subr.mxu0 0.0
        %262 = vmatpush1.msra.mxu0 0.0
        %263 = vmatprep.subr.mxu0 0.0
        %264 = vmatpush1.msra.mxu0 0.0
        %265 = vmatprep.subr.mxu0 0.0
        %266 = vmatpush1.msra.mxu0 0.0
        %267 = vmatprep.subr.mxu0 0.0
        %268 = vmatpush1.msra.mxu0 0.0
        %269 = vmatprep.subr.mxu0 0.0
        %270 = vmatpush1.msra.mxu0 0.0
        %271 = vmatprep.subr.mxu0 0.0
        %272 = vmatpush1.msra.mxu0 0.0
        %273 = vmatprep.subr.mxu0 0.0
        %274 = vmatpush1.msra.mxu0 0.0
        %275 = vmatprep.subr.mxu0 0.0
        %276 = vmatpush1.msra.mxu0 0.0
        %277 = vmatprep.subr.mxu0 0.0
        %278 = vmatpush1.msra.mxu0 0.0
        %279 = vmatprep.subr.mxu0 0.0
        %280 = vmatpush1.msra.mxu0 0.0
        %281 = vmatprep.subr.mxu0 0.0
        %282 = vmatpush1.msra.mxu0 0.0
        %283 = vmatprep.subr.mxu0 0.0
        %284 = vmatpush1.msra.mxu0 0.0
        %285 = vmatprep.subr.mxu0 0.0
        %286 = vmatpush1.msra.mxu0 0.0
        %287 = vmatprep.subr.mxu0 0.0
        %288 = vmatpush1.msra.mxu0 0.0
        %289 = vmatprep.mubr.f32.mxu0 0.0
        %290 = vmatmul.mubr.f32.gmra.mrb[0].mxu0 %v219
        %v291 = vpop.f32.mrb[0].mxu0
        %v292 = vadd.f32 %v215, %v291
        %v293 = vpop.f32.mrb[0].mxu0
        %294 = vdwg.mxu0
        %vm295 = vcmask 124928
        %296 = vst.msk [vmem:[%s208] sm:$0x7] %vm295, %v292
        %p297 = scmp.lt.s32.totalorder %s21, 1
        %s298 = scalar_select %p297, %s21, 1
        %p299 = scmp.lt.s32.totalorder %s22, 0
        %s300 = scalar_select %p299, %s22, 0
        %s301 = sadd.s32 %s300, %s298
        %s302 = smul.addr %s301, 4
        %s303 = scalar_lea.vmem %s3, %s302
        // Predicated region
        $region37: #{tpu_custom_call.1} parent=31 // pred_check
          %p304 = pneg %p119
        $region38: #{tpu_custom_call.1} parent=31 // pred_check_branch
          %306 = sbr.rel (%p304) target = $region40
        $region39: #{tpu_custom_call.1} parent=31 // pred_region
          _
        $region40: #{tpu_custom_call.1} parent=31 // pred_fallthru
          _
      $region32: #{tpu_custom_call.1} parent=5 // pred_fallthru
        _
      %p307 = scmp.le.s32.totalorder 2, %s12
      // Predicated region
      $region41: #{tpu_custom_call.1} parent=5 // pred_check
        %p308 = pneg %p307
      $region42: #{tpu_custom_call.1} parent=5 // pred_check_branch
        %310 = sbr.rel (%p308) target = $region44
      $region43: #{tpu_custom_call.1} parent=5 // pred_region
        %s311 = ssub.s32 %s12, 2
        // Predicated region
        $region45: #{tpu_custom_call.1} parent=43 // pred_check
          %p312 = pneg %p125
        $region46: #{tpu_custom_call.1} parent=43 // pred_check_branch
          %314 = sbr.rel (%p312) target = $region48
        $region47: #{tpu_custom_call.1} parent=43 // pred_region
          %p315 = scmp.lt.s32.totalorder %s23, 1
          %s316 = scalar_select %p315, %s23, 1
          %p317 = scmp.lt.s32.totalorder %s24, 0
          %s318 = scalar_select %p317, %s24, 0
          %s319 = sadd.s32 %s318, %s316
          %s320 = smul.addr %s319, 4
          %s321 = scalar_lea.vmem %s3, %s320
        $region48: #{tpu_custom_call.1} parent=43 // pred_fallthru
          _
      $region44: #{tpu_custom_call.1} parent=5 // pred_fallthru
        _
    $region6: #{tpu_custom_call.1} parent=1 // loop_footer
      %s16 = sadd.s32 1, %s12
    $region7: #{tpu_custom_call.1} parent=1 // loop_footer_branch
      %11 = sbr.rel target = $region3
    $region8: #{tpu_custom_call.1} parent=1 // loop_exit
      _
    %322 = vsyncpa [#allocation3], 1
    %s323 = scalar_lea.sflag [#allocation3], 1
    %324 = vsyncpa %s323, 1

</llo_original>
